<compile_context>
chip_gen: v5e
topology: v5e:2x2
jax: 0.10.0
libtpu: 0.0.40
codegen_flags: <defaults>
</compile_context>

<pallas_src>
import jax
import jax.numpy as jnp
from jax.experimental import pallas as pl
from jax.experimental.pallas import tpu as pltpu

_TARGET_BLOCK_BYTES = 8 * 1024 * 1024    # ~8 MiB per buffer
_VMEM_LIMIT_BYTES = 48 * 1024 * 1024     # in+out double-buffered (32 MiB) + headroom
_SMALL_INPUT_BYTES = 1 << 20             # below this, plain jnp (let XLA fuse)


def _h_sigmoid_kernel(x_ref, o_ref):
    x = x_ref[...]
    # relu6(x + 3) / 6
    y = jnp.clip(x + 3.0, 0.0, 6.0) * (1.0 / 6.0)
    o_ref[...] = y.astype(o_ref.dtype)


def _choose_lane(total):
    """Largest lane-dense last dim dividing the element count."""
    for lane in (1024, 512, 256, 128):
        if total % lane == 0:
            return lane
    return None


def _choose_block_rows(rows, lane, itemsize):
    """Byte-based row-block sizing (~8 MiB/buffer), multiple of 32."""
    target = max(32, (_TARGET_BLOCK_BYTES // (lane * itemsize)) // 32 * 32)
    if rows > target:
        return target
    # Whole array fits one block. If it is big enough to be worth streaming,
    # split into two blocks so the "parallel" grid axis can shard across the
    # two TensorCores on v7x (no effect on v5e/v6e).
    if rows * lane * itemsize >= (1 << 20) and rows >= 64:
        half = -(-rows // 2)
        return min(rows, -(-half // 32) * 32)
    return rows


def h_sigmoid(x, *, force_pallas=False, block_rows=None):
    """Elementwise relu6(x + 3) / 6. Any shape, same shape/dtype out."""
    orig_shape = x.shape
    total = int(x.size)
    if total == 0:
        return x
    itemsize = x.dtype.itemsize
    nbytes = total * itemsize

    lane = _choose_lane(total)
    if lane is None or (not force_pallas and nbytes < _SMALL_INPUT_BYTES):
        # Ragged (not 128-divisible) or tiny input: a standalone custom call
        # is pure launch/DMA overhead — plain jnp fuses into the neighbors.
        return (jnp.clip(x + 3.0, 0.0, 6.0) * (1.0 / 6.0)).astype(x.dtype)

    rows = total // lane
    if block_rows is None:
        block_rows = _choose_block_rows(rows, lane, itemsize)
    block_rows = min(block_rows, rows)
    grid = (pl.cdiv(rows, block_rows),)   # partial last block masked by Pallas

    x2d = x.reshape(rows, lane)
    out2d = pl.pallas_call(
        _h_sigmoid_kernel,
        out_shape=jax.ShapeDtypeStruct((rows, lane), x.dtype),
        grid=grid,
        in_specs=[pl.BlockSpec((block_rows, lane), lambda i: (i, 0))],
        out_specs=pl.BlockSpec((block_rows, lane), lambda i: (i, 0)),
        compiler_params=pltpu.CompilerParams(
            dimension_semantics=("parallel",),
            vmem_limit_bytes=_VMEM_LIMIT_BYTES,
        ),
        cost_estimate=pl.CostEstimate(
            flops=4 * total,
            transcendentals=0,
            bytes_accessed=2 * nbytes,
        ),
    )(x2d)
    return out2d.reshape(orig_shape)


if __name__ == "__main__":
    key = jax.random.PRNGKey(0)
    k1, k2, k3, k4, k5 = jax.random.split(key, 5)

    def ref_fn(v):
        return (jnp.clip(v.astype(jnp.float32) + 3.0, 0.0, 6.0) / 6.0).astype(v.dtype)

    checks = []

    # 1) module-consistent NCHW input (lane=1024 path, single block)
    x1 = jax.random.normal(k1, (2, 4, 16, 16), jnp.float32) * 4.0
    o1 = jax.block_until_ready(h_sigmoid(x1, force_pallas=True))
    checks.append((o1, ref_fn(x1), 1e-6))

    # 2) multi-block grid with a masked partial last block (rows=10, block=8)
    x2 = jax.random.normal(k2, (2, 5, 16, 64), jnp.float32) * 4.0
    o2 = jax.block_until_ready(h_sigmoid(x2, force_pallas=True, block_rows=8))
    checks.append((o2, ref_fn(x2), 1e-6))

    # 3) narrow-lane path (size divisible by 128 but not 1024)
    x3 = jax.random.normal(k3, (3, 5, 8, 16), jnp.float32) * 4.0
    o3 = jax.block_until_ready(h_sigmoid(x3, force_pallas=True))
    checks.append((o3, ref_fn(x3), 1e-6))

    # 4) ragged size -> plain-jnp fallback path
    x4 = jax.random.normal(k4, (7, 9), jnp.float32) * 4.0
    o4 = jax.block_until_ready(h_sigmoid(x4))
    checks.append((o4, ref_fn(x4), 1e-6))

    # 5) bf16 input (dtype-aware block sizing)
    x5 = (jax.random.normal(k5, (4, 8, 32), jnp.float32) * 4.0).astype(jnp.bfloat16)
    o5 = jax.block_until_ready(h_sigmoid(x5, force_pallas=True))
    checks.append((o5, ref_fn(x5), 2e-2))

    for out, ref, tol in checks:
        assert out.shape == ref.shape and out.dtype == ref.dtype
        err = float(jnp.max(jnp.abs(out.astype(jnp.float32) - ref.astype(jnp.float32))))
        assert err <= tol, f"max abs err {err} > {tol}"

    print("KERNEL_OK")
</pallas_src>

<mosaic_0001>
module attributes {stable_mosaic.version = 11 : i64} {
  func.func @_h_sigmoid_kernel(%arg0: i32, %arg1: memref<2x1024xf32, #tpu.memory_space<vmem>>, %arg2: memref<2x1024xf32, #tpu.memory_space<vmem>>) attributes {dimension_semantics = [#tpu.dimension_semantics<parallel>], iteration_bounds = array<i64: 1>, scalar_prefetch = 0 : i64, scratch_operands = 0 : i64, tpu.core_type = #tpu.core_type<tc>, window_params = [{transform_indices = @transform_0, window_bounds = array<i64: 2, 1024>}, {transform_indices = @transform_1, window_bounds = array<i64: 2, 1024>}]} {
    %c0 = arith.constant 0 : index
    %c0_0 = arith.constant 0 : index
    %0 = vector.load %arg1[%c0, %c0_0] : memref<2x1024xf32, #tpu.memory_space<vmem>>, vector<2x1024xf32>
    %cst = arith.constant 3.000000e+00 : f32
    %1 = vector.broadcast %cst : f32 to vector<2x1024xf32>
    %2 = arith.addf %0, %1 : vector<2x1024xf32>
    %cst_1 = arith.constant 0.000000e+00 : f32
    %cst_2 = arith.constant 6.000000e+00 : f32
    %3 = vector.broadcast %cst_1 : f32 to vector<2x1024xf32>
    %4 = arith.maximumf %3, %2 : vector<2x1024xf32>
    %5 = vector.broadcast %cst_2 : f32 to vector<2x1024xf32>
    %6 = arith.minimumf %5, %4 : vector<2x1024xf32>
    %cst_3 = arith.constant 0.166666672 : f32
    %7 = vector.broadcast %cst_3 : f32 to vector<2x1024xf32>
    %8 = arith.mulf %6, %7 : vector<2x1024xf32>
    %c0_4 = arith.constant 0 : index
    %c0_5 = arith.constant 0 : index
    %9 = vector.load %arg2[%c0_4, %c0_5] : memref<2x1024xf32, #tpu.memory_space<vmem>>, vector<2x1024xf32>
    tpu.vector_store %arg2[%c0_4, %c0_5], %8 {strides = array<i32>} : memref<2x1024xf32, #tpu.memory_space<vmem>>, vector<2x1024xf32>,
    return
  }
  func.func @transform_0(%arg0: i32) -> (i32, i32) {
    %c0_i32 = arith.constant 0 : i32
    %c0_i32_0 = arith.constant 0 : i32
    return %arg0, %c0_i32 : i32, i32
  }
  func.func @transform_1(%arg0: i32) -> (i32, i32) {
    %c0_i32 = arith.constant 0 : i32
    %c0_i32_0 = arith.constant 0 : i32
    return %arg0, %c0_i32 : i32, i32
  }
}

</mosaic_0001>

<llo_original>
// kernel: tpu_custom_call.1
$region0: #{tpu_custom_call.1}
  #allocation0 [shape = 'u32[]', space=smem, size = 0x4, offset = 0x4, fixed_abs, tag = 'smem constant byte address 0x4 - core index']
  #allocation1 [shape = 'u32[72,128]{1,0:T(1,128)}', space=vmem, size = 0x9000, scoped, tag = 'internal scratch']
  %s0 = inlined_call_operand.hbm [shape: f32[2,1024], index: 0, kind: input, shape index: {}]
  %s1 = inlined_call_operand.hbm [shape: f32[2,1024], index: 1, kind: output, shape index: {}]
  %s2 = sld [smem:[#allocation0]]
  $region18: #{tpu_custom_call.1} parent=0
    _
  %s4 = ssub.s32 1, %s2
  %s5 = scalar_select 0, %s4, %s2
  $region1: #{tpu_custom_call.1} parent=0
    #allocation2 [shape = 'u8[8192]{0}', space=vmem, size = 0x2000, scoped, tag = 'input window, operand 0, single buffered']
    #allocation3 [shape = 's32[1]{0}', space=sflag, size = 0x4, scoped, tag = 'scoped memory for tpu_custom_call.1']
    #allocation4 [shape = 's32[1]{0}', space=sflag, size = 0x4, scoped, tag = 'scoped memory for tpu_custom_call.1']
    #allocation5 [shape = 'u8[8192]{0}', space=vmem, size = 0x2000, scoped, tag = 'output window, operand 0, single buffered']
    %6 = vsyncpa [#allocation3], 0
    %7 = vsyncpa [#allocation4], 0
    // Predicated region
    $region2: #{tpu_custom_call.1} parent=1 // pred_check
      _
    $region3: #{tpu_custom_call.1} parent=1 // pred_check_branch
      %9 = sbr.rel (0) target = $region5
    $region4: #{tpu_custom_call.1} parent=1 // pred_region
      %11 = vsyncadd [#allocation3], 0
      %s13 = sshll.u32 %s0, 4
      %s14 = int_to_ptr.hbm [resolvable:$true] %s13
      %s15 = sshll.u32 [#allocation2], 4
      %s16 = int_to_ptr.vmem [resolvable:$true] %s15
      %18 = dma.hbm_to_vmem [thread:$0]  %s14, 256, %s16, [#allocation3]
    $region5: #{tpu_custom_call.1} parent=1 // pred_fallthru
      _
    // Predicated region
    $region6: #{tpu_custom_call.1} parent=1 // pred_check
      _
    $region7: #{tpu_custom_call.1} parent=1 // pred_check_branch
      %20 = sbr.rel (0) target = $region9
    $region8: #{tpu_custom_call.1} parent=1 // pred_region
      %22 = dma.done [#allocation3], 256
    $region9: #{tpu_custom_call.1} parent=1 // pred_fallthru
      _
    %v23 = vld [vmem:[#allocation2] sm:$0xff]
    %v24 = vld [vmem:[#allocation2 + $0x8] sm:$0xff]
    %v25 = vadd.f32 %v23, 3.0
    %v26 = vadd.f32 %v24, 3.0
    %v27 = vmax.f32 %v25, 0.0
    %v28 = vmax.f32 %v26, 0.0
    %v29 = vmin.f32 %v27, 6.0
    %v30 = vmin.f32 %v28, 6.0
    %v31 = vmul.f32 %v29, 0.16666667
    %v32 = vmul.f32 %v30, 0.16666667
    %33 = vst [vmem:[#allocation5] sm:$0xff] %v31
    %34 = vst [vmem:[#allocation5 + $0x8] sm:$0xff] %v32
    // Predicated region
    $region10: #{tpu_custom_call.1} parent=1 // pred_check
      _
    $region11: #{tpu_custom_call.1} parent=1 // pred_check_branch
      %36 = sbr.rel (0) target = $region13
    $region12: #{tpu_custom_call.1} parent=1 // pred_region
      %38 = vsyncadd [#allocation4], 0
      %s40 = sshll.u32 [#allocation5], 4
      %s41 = int_to_ptr.vmem [resolvable:$true] %s40
      %s42 = sshll.u32 %s1, 4
      %s43 = int_to_ptr.hbm [resolvable:$true] %s42
      %45 = dma.vmem_to_hbm [thread:$0]  %s41, 256, %s43, [#allocation4]
    $region13: #{tpu_custom_call.1} parent=1 // pred_fallthru
      _
    // Predicated region
    $region14: #{tpu_custom_call.1} parent=1 // pred_check
      _
    $region15: #{tpu_custom_call.1} parent=1 // pred_check_branch
      %47 = sbr.rel (0) target = $region17
    $region16: #{tpu_custom_call.1} parent=1 // pred_region
      %49 = dma.done [#allocation4], 256
    $region17: #{tpu_custom_call.1} parent=1 // pred_fallthru
      _
    %50 = vsyncpa [#allocation3], 1
    %51 = vsyncpa [#allocation4], 1

</llo_original>
